<compile_context>
chip_gen: v7x
topology: tpu7x:2x2x1
jax: 0.10.0
libtpu: 0.0.40
codegen_flags: <defaults>
</compile_context>

<pallas_src>
import jax
import jax.numpy as jnp
from jax.experimental import pallas as pl
from jax.experimental.pallas import tpu as pltpu

_LANES = 128              # vreg lane width
_SUBLANES = 8             # f32 sublane count (one vreg row group)
_MIN_BLOCKS_PER_PART = 4  # load-balance granularity for the 2-core split


def _cdiv(a, b):
    return -(-a // b)


def _round_up(a, b):
    return _cdiv(a, b) * b


def _tensorcores_per_chip():
    """Best-effort count of TensorCores one pallas_call can megacore across.

    Known single-core chips (v2/v3/v5e/v6e) -> 1.  Everything else (v4/v5p
    megacore, v7x, unknown future chips) -> 2.  Over-estimating only costs one
    extra 4 KiB partial block + init on a 1-core chip; under-estimating would
    leave a whole TensorCore idle on a 2-core chip.
    """
    try:
        kind = jax.devices()[0].device_kind.lower()
    except Exception:
        return 2
    single_core_tags = ("v2", "v3", "v5e", "v5 lite", "v5lite",
                        "v6e", "v6 lite", "v6lite")
    if any(tag in kind for tag in single_core_tags):
        return 1
    return 2


def _make_kld_kernel(rows, block_rows, steps, needs_mask):
    """Grid is (parts, steps).  The (1, 8, 128) output block is resident across
    the 'steps' (arbitrary) axis and used directly as a vector accumulator."""

    def kernel(mu_ref, logvar_ref, out_ref):
        k = pl.program_id(1)

        @pl.when(k == 0)
        def _():
            out_ref[...] = jnp.zeros_like(out_ref)

        # Native-dtype DMA; cast to f32 only in VMEM (halves HBM traffic for
        # bf16 inputs and removes the wrapper-side convert kernel).
        mu = mu_ref[...].astype(jnp.float32)
        lv = logvar_ref[...].astype(jnp.float32)

        if needs_mask:
            # Zero rows past the true row count.  Zeroed elements contribute
            # exactly 0 to the loss: 1 + 0 - 0 - exp(0) == 0.  Out-of-bounds
            # block data is unspecified, so mask BEFORE the exp/square.
            row0 = (pl.program_id(0) * steps + k) * block_rows
            rid = jax.lax.broadcasted_iota(jnp.int32, (block_rows, _LANES), 0)
            valid = (row0 + rid) < rows
            mu = jnp.where(valid, mu, 0.0)
            lv = jnp.where(valid, lv, 0.0)

        # elementwise hot path: 1 + logvar - mu^2 - exp(logvar)
        term = 1.0 + lv - mu * mu - jnp.exp(lv)
        # (block_rows, 128) -> (8, 128): reduce over the major axis == pure
        # vreg adds on the VPU, lanes/sublanes stay fully dense.
        partial = jnp.sum(term.reshape(-1, _SUBLANES, _LANES), axis=0)
        out_ref[...] += partial.reshape(1, _SUBLANES, _LANES)

    return kernel


def kl_divergence(mu, logvar, N, *, target_block_bytes=6 << 20,
                  vmem_limit_bytes=None):
    """Pallas implementation of KLDivergence(N).forward(mu, logvar)."""
    assert mu.shape == logvar.shape, (mu.shape, logvar.shape)
    total = int(mu.size)
    if total == 0:
        return jnp.zeros((), jnp.float32)

    i_mu = jnp.dtype(mu.dtype).itemsize
    i_lv = jnp.dtype(logvar.dtype).itemsize
    itemsize_max = max(i_mu, i_lv)
    # Sublane packing of the narrowest input dtype sets the row alignment:
    # 8 rows for 4-byte, 16 for 2-byte (bf16/f16), 32 for 1-byte.
    sub_align = _SUBLANES * max(1, 4 // max(1, min(i_mu, i_lv)))

    # ---- lane-dense view, no grid-sized padding -----------------------------
    mu_flat = mu.reshape(-1)
    lv_flat = logvar.reshape(-1)
    rows = _cdiv(total, _LANES)
    pad_cols = rows * _LANES - total
    if pad_cols:
        # Only when total % 128 != 0 (small/ragged inputs).  Zero padding is
        # exact for this loss: 1 + 0 - 0 - exp(0) == 0.
        mu_flat = jnp.pad(mu_flat, (0, pad_cols))
        lv_flat = jnp.pad(lv_flat, (0, pad_cols))
    mu2d = mu_flat.reshape(rows, _LANES)
    lv2d = lv_flat.reshape(rows, _LANES)

    # ---- tiling -------------------------------------------------------------
    target_rows = max(
        sub_align,
        (target_block_bytes // (_LANES * itemsize_max)) // sub_align * sub_align)
    block_rows = min(target_rows, _round_up(rows, sub_align))

    # Two 'parallel' parts whenever the chip has two TensorCores usable by a
    # single pallas_call and there is enough work; on 1-TC chips (v5e/v6e)
    # keep one part and the largest possible tiles.
    num_parts = (2 if _tensorcores_per_chip() >= 2 and rows >= 2 * sub_align
                 else 1)
    if num_parts == 2:
        # Cap the tile so each part gets >= _MIN_BLOCKS_PER_PART blocks, which
        # keeps the two cores' work within ~1/(2*MIN) of each other.
        block_rows = min(
            block_rows,
            _round_up(_cdiv(rows, 2 * _MIN_BLOCKS_PER_PART), sub_align))

    steps = _cdiv(rows, block_rows * num_parts)
    coverage_rows = num_parts * steps * block_rows
    needs_mask = coverage_rows > rows

    # Grid blocks past the last real block (possible for the second part when
    # the block count is odd) are clamped onto the last real block so the DMA
    # never reads outside the array; the in-kernel row mask (computed from the
    # *logical* block id) zeroes their whole contribution.
    last_block = _cdiv(rows, block_rows) - 1

    def index_map(p, k):
        return (jnp.minimum(p * steps + k, last_block), 0)

    in_spec = pl.BlockSpec((block_rows, _LANES), index_map)

    if vmem_limit_bytes is None:
        per_slot = block_rows * _LANES * (i_mu + i_lv)   # both inputs, one buf
        vmem_limit_bytes = max(32 << 20, 2 * per_slot + (4 << 20))

    kernel = _make_kld_kernel(rows, block_rows, steps, needs_mask)

    partials = pl.pallas_call(
        kernel,
        out_shape=jax.ShapeDtypeStruct((num_parts, _SUBLANES, _LANES),
                                       jnp.float32),
        grid_spec=pltpu.PrefetchScalarGridSpec(
            num_scalar_prefetch=0,
            grid=(num_parts, steps),
            in_specs=[in_spec, in_spec],
            out_specs=pl.BlockSpec((1, _SUBLANES, _LANES),
                                   lambda p, k: (p, 0, 0)),
        ),
        compiler_params=pltpu.CompilerParams(
            dimension_semantics=("parallel", "arbitrary"),
            vmem_limit_bytes=int(vmem_limit_bytes)),
    )(mu2d, lv2d)

    # Tiny finish (<= 2*8*128 floats): cross-lane reduce + (-0.5/N) scale in
    # XLA.  Folding this into a kernel epilogue only saves a few us for very
    # small inputs, so it is intentionally kept out of the kernel.
    return (-0.5 / float(N)) * jnp.sum(partials)


def _reference(mu, logvar, N):
    mu = mu.astype(jnp.float32)
    logvar = logvar.astype(jnp.float32)
    return jnp.sum(
        -0.5 * jnp.sum(1.0 + logvar - mu**2 - jnp.exp(logvar), axis=1),
        axis=0) / N


if __name__ == "__main__":
    key = jax.random.PRNGKey(0)
    keys = jax.random.split(key, 8)

    # 1) Small shape matching the module's convention (batch x latent dim).
    #    rows=2 < one 8-row block -> ragged block + in-kernel mask, no padding.
    B, D = 8, 32
    mu = jax.random.normal(keys[0], (B, D), dtype=jnp.float32)
    logvar = 0.5 * jax.random.normal(keys[1], (B, D), dtype=jnp.float32)
    out = jax.block_until_ready(kl_divergence(mu, logvar, B))
    ref = _reference(mu, logvar, B)
    assert jnp.allclose(out, ref, rtol=1e-4, atol=1e-4), (out, ref)

    # 2) total % 128 != 0 -> minimal 128-boundary pad fallback (exact zeros).
    B, D = 2, 20
    mu = jax.random.normal(keys[2], (B, D), dtype=jnp.float32)
    logvar = 0.5 * jax.random.normal(keys[3], (B, D), dtype=jnp.float32)
    out = jax.block_until_ready(kl_divergence(mu, logvar, B))
    ref = _reference(mu, logvar, B)
    assert jnp.allclose(out, ref, rtol=1e-4, atol=1e-4), (out, ref)

    # 3) bf16 inputs with a small tile target -> native-dtype DMA + in-kernel
    #    f32 cast, multi-step grid, 2-part path on 2-core chips.
    B, D = 64, 1024
    mu = jax.random.normal(keys[4], (B, D), dtype=jnp.bfloat16)
    logvar = 0.5 * jax.random.normal(keys[5], (B, D), dtype=jnp.bfloat16)
    out = jax.block_until_ready(
        kl_divergence(mu, logvar, B, target_block_bytes=64 * 1024))
    ref = _reference(mu, logvar, B)
    assert jnp.allclose(out, ref, rtol=1e-3, atol=1e-3), (out, ref)

    # 4) Odd block count with tiny tiles -> ragged boundary block and (on
    #    2-core chips) a fully out-of-range block that is clamped + masked.
    B, D = 17, 512
    mu = jax.random.normal(keys[6], (B, D), dtype=jnp.float32)
    logvar = 0.5 * jax.random.normal(keys[7], (B, D), dtype=jnp.float32)
    out = jax.block_until_ready(
        kl_divergence(mu, logvar, B, target_block_bytes=4096))
    ref = _reference(mu, logvar, B)
    assert jnp.allclose(out, ref, rtol=1e-3, atol=1e-3), (out, ref)

    print("KERNEL_OK")
</pallas_src>

<mosaic_0001>
module attributes {stable_mosaic.version = 11 : i64} {
  func.func @kernel(%arg0: i32, %arg1: i32, %arg2: memref<8x128xf32, #tpu.memory_space<vmem>>, %arg3: memref<8x128xf32, #tpu.memory_space<vmem>>, %arg4: memref<1x8x128xf32, #tpu.memory_space<vmem>>) attributes {dimension_semantics = [#tpu.dimension_semantics<parallel>, #tpu.dimension_semantics<arbitrary>], iteration_bounds = array<i64: 1, 1>, scalar_prefetch = 0 : i64, scratch_operands = 0 : i64, tpu.core_type = #tpu.core_type<tc>, window_params = [{transform_indices = @transform_0, window_bounds = array<i64: 8, 128>}, {transform_indices = @transform_1, window_bounds = array<i64: 8, 128>}, {transform_indices = @transform_2, window_bounds = array<i64: 1, 8, 128>}]} {
    %c0_i32 = arith.constant 0 : i32
    %0 = arith.cmpi eq, %arg1, %c0_i32 : i32
    %1 = arith.extui %0 : i1 to i32
    %c0_i32_0 = arith.constant 0 : i32
    %2 = arith.cmpi ne, %1, %c0_i32_0 : i32
    scf.if %2 {
      %cst_13 = arith.constant 0.000000e+00 : f32
      %29 = vector.broadcast %cst_13 : f32 to vector<1x8x128xf32>
      %c0_14 = arith.constant 0 : index
      %c0_15 = arith.constant 0 : index
      %c0_16 = arith.constant 0 : index
      %30 = vector.load %arg4[%c0_14, %c0_15, %c0_16] : memref<1x8x128xf32, #tpu.memory_space<vmem>>, vector<1x8x128xf32>
      tpu.vector_store %arg4[%c0_14, %c0_15, %c0_16], %29 {strides = array<i32>} : memref<1x8x128xf32, #tpu.memory_space<vmem>>, vector<1x8x128xf32>,
    } else {
    }
    %c0 = arith.constant 0 : index
    %c0_1 = arith.constant 0 : index
    %3 = vector.load %arg2[%c0, %c0_1] : memref<8x128xf32, #tpu.memory_space<vmem>>, vector<8x128xf32>
    %c0_2 = arith.constant 0 : index
    %c0_3 = arith.constant 0 : index
    %4 = vector.load %arg3[%c0_2, %c0_3] : memref<8x128xf32, #tpu.memory_space<vmem>>, vector<8x128xf32>
    %c1_i32 = arith.constant 1 : i32
    %5 = arith.muli %arg0, %c1_i32 : i32
    %6 = arith.addi %5, %arg1 : i32
    %c8_i32 = arith.constant 8 : i32
    %7 = arith.muli %6, %c8_i32 : i32
    %8 = tpu.iota {dimensions = array<i32: 0>} : vector<8x128xi32>
    %9 = vector.broadcast %7 : i32 to vector<8x128xi32>
    %10 = arith.addi %9, %8 : vector<8x128xi32>
    %c2_i32 = arith.constant 2 : i32
    %11 = vector.broadcast %c2_i32 : i32 to vector<8x128xi32>
    %12 = arith.cmpi slt, %10, %11 : vector<8x128xi32>
    %cst = arith.constant 0.000000e+00 : f32
    %13 = vector.broadcast %cst : f32 to vector<8x128xf32>
    %14 = arith.select %12, %3, %13 : vector<8x128xi1>, vector<8x128xf32>
    %cst_4 = arith.constant 0.000000e+00 : f32
    %15 = vector.broadcast %cst_4 : f32 to vector<8x128xf32>
    %16 = arith.select %12, %4, %15 : vector<8x128xi1>, vector<8x128xf32>
    %cst_5 = arith.constant 1.000000e+00 : f32
    %17 = vector.broadcast %cst_5 : f32 to vector<8x128xf32>
    %18 = arith.addf %17, %16 : vector<8x128xf32>
    %19 = arith.mulf %14, %14 : vector<8x128xf32>
    %20 = arith.subf %18, %19 : vector<8x128xf32>
    %21 = math.exp %16 : vector<8x128xf32>
    %22 = arith.subf %20, %21 : vector<8x128xf32>
    %23 = vector.shape_cast %22 : vector<8x128xf32> to vector<1x8x128xf32>
    %cst_6 = arith.constant dense<0.000000e+00> : vector<8x128xf32>
    %24 = vector.multi_reduction <add>, %23, %cst_6 [0] : vector<1x8x128xf32> to vector<8x128xf32>
    %c0_7 = arith.constant 0 : index
    %c0_8 = arith.constant 0 : index
    %c0_9 = arith.constant 0 : index
    %25 = vector.load %arg4[%c0_7, %c0_8, %c0_9] : memref<1x8x128xf32, #tpu.memory_space<vmem>>, vector<1x8x128xf32>
    %26 = vector.shape_cast %24 : vector<8x128xf32> to vector<1x8x128xf32>
    %27 = arith.addf %25, %26 : vector<1x8x128xf32>
    %c0_10 = arith.constant 0 : index
    %c0_11 = arith.constant 0 : index
    %c0_12 = arith.constant 0 : index
    %28 = vector.load %arg4[%c0_10, %c0_11, %c0_12] : memref<1x8x128xf32, #tpu.memory_space<vmem>>, vector<1x8x128xf32>
    tpu.vector_store %arg4[%c0_10, %c0_11, %c0_12], %27 {strides = array<i32>} : memref<1x8x128xf32, #tpu.memory_space<vmem>>, vector<1x8x128xf32>,
    return
  }
  func.func @transform_0(%arg0: i32, %arg1: i32) -> (i32, i32) {
    %c1_i32 = arith.constant 1 : i32
    %0 = arith.muli %arg0, %c1_i32 : i32
    %1 = arith.addi %0, %arg1 : i32
    %c0_i32 = arith.constant 0 : i32
    %2 = arith.minsi %1, %c0_i32 : i32
    %c0_i32_0 = arith.constant 0 : i32
    %c0_i32_1 = arith.constant 0 : i32
    return %2, %c0_i32_0 : i32, i32
  }
  func.func @transform_1(%arg0: i32, %arg1: i32) -> (i32, i32) {
    %c1_i32 = arith.constant 1 : i32
    %0 = arith.muli %arg0, %c1_i32 : i32
    %1 = arith.addi %0, %arg1 : i32
    %c0_i32 = arith.constant 0 : i32
    %2 = arith.minsi %1, %c0_i32 : i32
    %c0_i32_0 = arith.constant 0 : i32
    %c0_i32_1 = arith.constant 0 : i32
    return %2, %c0_i32_0 : i32, i32
  }
  func.func @transform_2(%arg0: i32, %arg1: i32) -> (i32, i32, i32) {
    %c0_i32 = arith.constant 0 : i32
    %c0_i32_0 = arith.constant 0 : i32
    %c0_i32_1 = arith.constant 0 : i32
    return %arg0, %c0_i32, %c0_i32_0 : i32, i32, i32
  }
}

</mosaic_0001>

<llo_original>
// kernel: tpu_custom_call.1
$region0: #{tpu_custom_call.1}
  #allocation0 [shape = 'u32[]', space=smem, size = 0x4, offset = 0x4, fixed_abs, tag = 'smem constant byte address 0x4 - core index']
  #allocation1 [shape = 'u32[144,128]{1,0:T(1,128)}', space=vmem, size = 0x12000, scoped, tag = 'internal scratch']
  %s0 = inlined_call_operand.hbm [shape: f32[2,128], index: 0, kind: input, shape index: {}]
  %s1 = inlined_call_operand.vmem [shape: f32[2,128], index: 1, kind: input, shape index: {}]
  %s2 = inlined_call_operand.hbm [shape: f32[1,8,128], index: 2, kind: output, shape index: {}]
  %s3 = sld [smem:[#allocation0]]
  $region26: #{tpu_custom_call.1} parent=0
    _
  %s5 = ssub.s32 1, %s3
  %s6 = scalar_select 0, %s5, %s3
  $region1: #{tpu_custom_call.1} parent=0
    #allocation2 [shape = 'u8[4096]{0}', space=vmem, size = 0x1000, scoped, tag = 'input window, operand 0, single buffered']
    #allocation3 [shape = 's32[1]{0}', space=sflag, size = 0x4, scoped, tag = 'scoped memory for tpu_custom_call.1']
    #allocation4 [shape = 's32[1]{0}', space=sflag, size = 0x4, scoped, tag = 'scoped memory for tpu_custom_call.1']
    #allocation5 [shape = 'u8[4096]{0}', space=vmem, size = 0x1000, scoped, tag = 'output window, operand 0, single buffered']
    %7 = vsyncpa [#allocation3], 0
    %8 = vsyncpa [#allocation4], 0
    // Predicated region
    $region2: #{tpu_custom_call.1} parent=1 // pred_check
      _
    $region3: #{tpu_custom_call.1} parent=1 // pred_check_branch
      %10 = sbr.rel (0) target = $region5
    $region4: #{tpu_custom_call.1} parent=1 // pred_region
      %s11 = sadd.s32 0, 0
      %p12 = scmp.lt.s32.totalorder %s11, 0
      %s13 = scalar_select %p12, %s11, 0
      %s14 = smul.u32 4, %s13
      %s15 = ssub.s32 1, %s14
      %s16 = smul.u32 32, %s15
      %s18 = ssub.s32 128, %s16
      %19 = vsyncadd [#allocation3], %s18
      %p20 = scmp.ne.s32.totalorder 0, %s16
      %s21 = smul.addr %s14, 32
      %s22 = scalar_lea.hbm %s0, %s21
      %s23 = smul.u32 2, %s15
      %s24 = sshll.u32 [#allocation2], 4
      %s25 = int_to_ptr.vmem [resolvable:$true] %s24
      %s26 = sshll.u32 %s23, 4
      %30 = dma.hbm_to_vmem [thread:$0]  (%p20), %s22, %s26, %s25, [#allocation3], 32, 32, 2
    $region5: #{tpu_custom_call.1} parent=1 // pred_fallthru
      _
    // Predicated region
    $region6: #{tpu_custom_call.1} parent=1 // pred_check
      _
    $region7: #{tpu_custom_call.1} parent=1 // pred_check_branch
      %32 = sbr.rel (0) target = $region9
    $region8: #{tpu_custom_call.1} parent=1 // pred_region
      %s33 = sadd.s32 0, 0
      %p34 = scmp.lt.s32.totalorder %s33, 0
      %s35 = scalar_select %p34, %s33, 0
      %s36 = smul.u32 4, %s35
      %s37 = ssub.s32 1, %s36
      %s38 = smul.u32 32, %s37
      %p39 = scmp.lt.s32.totalorder %s36, 0
      %s40 = scalar_select %p39, %s36, 0
      %s41 = smul.addr %s40, 2
      %s42 = scalar_lea.vmem %s1, %s41
      %s43 = sadd.s32 0, 0
      %p44 = scmp.lt.s32.totalorder %s43, 0
      %s45 = scalar_select %p44, %s43, 0
      %s46 = smul.u32 4, %s45
      %s47 = ssub.s32 1, %s46
      %s48 = smul.u32 32, %s47
    $region9: #{tpu_custom_call.1} parent=1 // pred_fallthru
      _
    // Predicated region
    $region10: #{tpu_custom_call.1} parent=1 // pred_check
      _
    $region11: #{tpu_custom_call.1} parent=1 // pred_check_branch
      %50 = sbr.rel (0) target = $region13
    $region12: #{tpu_custom_call.1} parent=1 // pred_region
      %51 = dma.done [#allocation3], 128
    $region13: #{tpu_custom_call.1} parent=1 // pred_fallthru
      _
    %s52 = sadd.s32 0, 0
    %p53 = scmp.lt.s32.totalorder %s52, 0
    %s54 = scalar_select %p53, %s52, 0
    %s55 = smul.u32 4, %s54
    %s56 = ssub.s32 1, %s55
    %s57 = smul.u32 32, %s56
    %p58 = scmp.lt.s32.totalorder %s55, 0
    %s59 = scalar_select %p58, %s55, 0
    %s60 = smul.addr %s59, 2
    %s61 = scalar_lea.vmem %s1, %s60
    %s62 = sadd.s32 0, 0
    %p63 = scmp.lt.s32.totalorder %s62, 0
    %s64 = scalar_select %p63, %s62, 0
    %s65 = smul.u32 4, %s64
    %s66 = ssub.s32 1, %s65
    %s67 = smul.u32 32, %s66
    %s68 = sadd.s32 0, 0
    %p69 = scmp.lt.s32.totalorder %s68, 0
    %s70 = scalar_select %p69, %s68, 0
    %s71 = smul.u32 4, %s70
    %s72 = ssub.s32 1, %s71
    %s73 = smul.u32 32, %s72
    %p74 = scmp.lt.s32.totalorder %s71, 0
    %s75 = scalar_select %p74, %s71, 0
    %s76 = smul.addr %s75, 2
    %s77 = scalar_lea.vmem %s1, %s76
    %s78 = sadd.s32 0, 0
    %p79 = scmp.lt.s32.totalorder %s78, 0
    %s80 = scalar_select %p79, %s78, 0
    %s81 = smul.u32 4, %s80
    %s82 = ssub.s32 1, %s81
    %s83 = smul.u32 32, %s82
    %p84 = scmp.eq.s32.totalorder 0, 0
    // Predicated region
    $region14: #{tpu_custom_call.1} parent=1 // pred_check
      %p85 = pneg %p84
    $region15: #{tpu_custom_call.1} parent=1 // pred_check_branch
      %87 = sbr.rel (%p85) target = $region17
    $region16: #{tpu_custom_call.1} parent=1 // pred_region
      %88 = vst [vmem:[#allocation5] sm:$0xff] 0.0
    $region17: #{tpu_custom_call.1} parent=1 // pred_fallthru
      _
    %v89 = vld [vmem:[#allocation2] sm:$0xff]
    %v90 = vld [vmem:[%s77] sm:$0xff]
    %s91 = sadd.s32 0, 0
    %s92 = smul.u32 %s91, 8
    %v93 = vlaneseq
    %v94 = vshrl.u32 %v93, 7
    %v95 = vstv %s92
    %v96 = vadd.s32 %v95, %v94
    %vm97 = vcmp.lt.s32.totalorder %v96, 2
    %v98 = vsel %vm97, %v89, 0.0
    %v99 = vsel %vm97, %v90, 0.0
    %v100 = vadd.f32 %v99, 1.0
    %v101 = vmul.f32 %v98, %v98
    %v102 = vsub.f32 %v100, %v101
    %v103 = vmul.f32 %v99, 1.442695
    %v104 = vpow.pop %v103
    %v105 = vsub.f32 %v102, %v104
    %v106 = vadd.f32 %v105, 0.0
    %v107 = vld [vmem:[#allocation5] sm:$0xff]
    %v108 = vadd.f32 %v107, %v106
    %109 = vst [vmem:[#allocation5] sm:$0xff] %v108
    // Predicated region
    $region18: #{tpu_custom_call.1} parent=1 // pred_check
      _
    $region19: #{tpu_custom_call.1} parent=1 // pred_check_branch
      %111 = sbr.rel (0) target = $region21
    $region20: #{tpu_custom_call.1} parent=1 // pred_region
      %s113 = ssub.s32 128, 128
      %114 = vsyncadd [#allocation4], %s113
      %s116 = sshll.u32 [#allocation5], 4
      %s117 = int_to_ptr.vmem [resolvable:$true] %s116
      %119 = dma.vmem_to_hbm [thread:$0]  %s117, 128, %s2, [#allocation4]
    $region21: #{tpu_custom_call.1} parent=1 // pred_fallthru
      _
    // Predicated region
    $region22: #{tpu_custom_call.1} parent=1 // pred_check
      _
    $region23: #{tpu_custom_call.1} parent=1 // pred_check_branch
      %121 = sbr.rel (0) target = $region25
    $region24: #{tpu_custom_call.1} parent=1 // pred_region
      %122 = dma.done [#allocation4], 128
    $region25: #{tpu_custom_call.1} parent=1 // pred_fallthru
      _
    %123 = vsyncpa [#allocation3], 1
    %124 = vsyncpa [#allocation4], 1

</llo_original>
